<compile_context>
chip_gen: v5e
topology: v5e:2x2
jax: 0.10.0
libtpu: 0.0.40
codegen_flags: <defaults>
</compile_context>

<pallas_src>
import functools

import numpy as np
import jax
import jax.numpy as jnp
from jax import lax
from jax.experimental import pallas as pl
from jax.experimental.pallas import tpu as pltpu

LN_EPS = 1e-5  # PyTorch nn.LayerNorm default eps


def fnet_block_kernel(x_ref, seq_ref, feat_ref, gamma_ref, beta_ref, o_ref):
    tb, s, d = x_ref.shape
    x = x_ref[...]                                   # (TB, S, D)  f32
    x_flat = x.reshape(tb * s, d)                    # collapse batch into MXU M dim
    xb = x_flat.astype(jnp.bfloat16)

    # --- matmul 1 (feature DFT, fat N = 2D, batch folded into M):
    #     P = x_flat @ [C_D | S_D]
    p = jnp.dot(xb, feat_ref[...],
                preferred_element_type=jnp.float32)  # (TB*S, 2D) f32
    p = p.reshape(tb, s, 2 * d)                      # free split of leading dim

    # Restack the two lane halves as row blocks so the subtraction collapses
    # into a single fat matmul (aligned lane-block slice when D % 128 == 0).
    q = jnp.concatenate([p[..., :d], p[..., d:]], axis=1)      # (TB, 2S, D) f32

    # --- matmul 2 (sequence DFT, fat K = 2S, batched over TB):
    #     Re(FFT2(x)) = [C_S | -S_S] @ [x C_D ; x S_D]
    seq_b = jnp.broadcast_to(seq_ref[...], (tb, s, 2 * s))     # (TB, S, 2S) bf16
    fft_real = jnp.einsum("bps,bsd->bpd", seq_b, q.astype(jnp.bfloat16),
                          preferred_element_type=jnp.float32)  # (TB, S, D) f32

    # TODO(synk): dropout is identity here (inference / eval-mode semantics).
    y = fft_real + x                                 # residual add (f32)

    # LayerNorm over the last dim, f32 math; rsqrt runs on the EUP slot.
    mean = jnp.mean(y, axis=-1, keepdims=True)
    centered = y - mean
    var = jnp.mean(centered * centered, axis=-1, keepdims=True)
    normed = centered * lax.rsqrt(var + LN_EPS)
    o_ref[...] = normed * gamma_ref[...] + beta_ref[...]


@functools.lru_cache(maxsize=None)
def _dft_constants(s, d):
    """Host-stacked DFT matrices: [C_S | -S_S] (S,2S) and [C_D | S_D] (D,2D)."""
    ks = np.arange(s)
    ang_s = 2.0 * np.pi * np.outer(ks, ks) / s
    seq_dft = np.concatenate([np.cos(ang_s), -np.sin(ang_s)], axis=1)
    kd = np.arange(d)
    ang_d = 2.0 * np.pi * np.outer(kd, kd) / d
    feat_dft = np.concatenate([np.cos(ang_d), np.sin(ang_d)], axis=1)
    return seq_dft.astype(np.float32), feat_dft.astype(np.float32)


def _pick_batch_block(batch, seq_len, dim):
    """Largest divisor of batch with tb*S <= ~512 rows and a small VMEM footprint."""
    row_target = max(1, 512 // max(seq_len, 1))
    vmem_target = max(1, (2 << 20) // max(seq_len * dim * 4, 1))  # ~2 MiB x-slab cap
    target = max(1, min(row_target, vmem_target))
    tb = 1
    for cand in range(1, batch + 1):
        if batch % cand == 0 and cand <= target:
            tb = cand
    return tb


def fnet_block(x, gamma, beta):
    B, S, D = x.shape
    x = x.astype(jnp.float32)
    seq_np, feat_np = _dft_constants(S, D)
    seq_dft = jnp.asarray(seq_np, dtype=jnp.bfloat16)    # bf16 MXU operands,
    feat_dft = jnp.asarray(feat_np, dtype=jnp.bfloat16)  # f32 accumulation.
    gamma2 = gamma.reshape(1, D).astype(jnp.float32)
    beta2 = beta.reshape(1, D).astype(jnp.float32)
    tb = _pick_batch_block(B, S, D)

    return pl.pallas_call(
        fnet_block_kernel,
        out_shape=jax.ShapeDtypeStruct((B, S, D), jnp.float32),
        grid_spec=pltpu.PrefetchScalarGridSpec(
            num_scalar_prefetch=0,
            grid=(B // tb,),
            in_specs=[
                pl.BlockSpec((tb, S, D), lambda b: (b, 0, 0)),   # x slab (TB batches)
                pl.BlockSpec((S, 2 * S), lambda b: (0, 0)),      # [C_S | -S_S]
                pl.BlockSpec((D, 2 * D), lambda b: (0, 0)),      # [C_D |  S_D]
                pl.BlockSpec((1, D), lambda b: (0, 0)),          # gamma
                pl.BlockSpec((1, D), lambda b: (0, 0)),          # beta
            ],
            out_specs=pl.BlockSpec((tb, S, D), lambda b: (b, 0, 0)),
        ),
        compiler_params=pltpu.CompilerParams(
            dimension_semantics=("parallel",),
            vmem_limit_bytes=32 * 1024 * 1024,
        ),
    )(x, seq_dft, feat_dft, gamma2, beta2)


def fnet_block_ref(x, gamma, beta):
    fft_real = jnp.real(jnp.fft.fft2(x, axes=(-2, -1))).astype(jnp.float32)
    y = fft_real + x
    mean = jnp.mean(y, axis=-1, keepdims=True)
    var = jnp.mean((y - mean) ** 2, axis=-1, keepdims=True)
    normed = (y - mean) * lax.rsqrt(var + LN_EPS)
    return normed * gamma + beta


if __name__ == "__main__":
    B, S, D = 2, 8, 32          # batch, seq_len, output_dim
    key = jax.random.PRNGKey(0)
    x = jax.random.normal(key, (B, S, D), dtype=jnp.float32)

    # Deterministic parameters (PyTorch LayerNorm default init: gamma=1, beta=0).
    gamma = jnp.ones((D,), dtype=jnp.float32)
    beta = jnp.zeros((D,), dtype=jnp.float32)

    out = jax.block_until_ready(fnet_block(x, gamma, beta))
    ref = jax.block_until_ready(fnet_block_ref(x, gamma, beta))

    # bf16 matmul operands (f32 accumulation) compound rounding through the two
    # DFT matmuls; LayerNorm keeps outputs O(1), so 5e-2 comfortably bounds it.
    np.testing.assert_allclose(np.asarray(out), np.asarray(ref),
                               atol=5e-2, rtol=5e-2)
    print("KERNEL_OK")
</pallas_src>

<mosaic_0001>
module attributes {stable_mosaic.version = 11 : i64} {
  func.func @fnet_block_kernel(%arg0: i32, %arg1: memref<2x8x32xf32, #tpu.memory_space<vmem>>, %arg2: memref<8x16xbf16, #tpu.memory_space<vmem>>, %arg3: memref<32x64xbf16, #tpu.memory_space<vmem>>, %arg4: memref<1x32xf32, #tpu.memory_space<vmem>>, %arg5: memref<1x32xf32, #tpu.memory_space<vmem>>, %arg6: memref<2x8x32xf32, #tpu.memory_space<vmem>>) attributes {dimension_semantics = [#tpu.dimension_semantics<parallel>], iteration_bounds = array<i64: 1>, scalar_prefetch = 0 : i64, scratch_operands = 0 : i64, tpu.core_type = #tpu.core_type<tc>, window_params = [{transform_indices = @transform_0, window_bounds = array<i64: 2, 8, 32>}, {pipeline_mode = #tpu.pipeline_mode<synchronous>, transform_indices = @transform_1, window_bounds = array<i64: 8, 16>}, {pipeline_mode = #tpu.pipeline_mode<synchronous>, transform_indices = @transform_2, window_bounds = array<i64: 32, 64>}, {pipeline_mode = #tpu.pipeline_mode<synchronous>, transform_indices = @transform_3, window_bounds = array<i64: 1, 32>}, {pipeline_mode = #tpu.pipeline_mode<synchronous>, transform_indices = @transform_4, window_bounds = array<i64: 1, 32>}, {transform_indices = @transform_5, window_bounds = array<i64: 2, 8, 32>}]} {
    %c0 = arith.constant 0 : index
    %c0_0 = arith.constant 0 : index
    %c0_1 = arith.constant 0 : index
    %0 = vector.load %arg1[%c0, %c0_0, %c0_1] : memref<2x8x32xf32, #tpu.memory_space<vmem>>, vector<2x8x32xf32>
    %1 = vector.shape_cast %0 : vector<2x8x32xf32> to vector<16x32xf32>
    %2 = arith.truncf %1 : vector<16x32xf32> to vector<16x32xbf16>
    %c0_2 = arith.constant 0 : index
    %c0_3 = arith.constant 0 : index
    %3 = vector.load %arg3[%c0_2, %c0_3] : memref<32x64xbf16, #tpu.memory_space<vmem>>, vector<32x64xbf16>
    %cst = arith.constant dense<0.000000e+00> : vector<16x64xf32>
    %4 = tpu.matmul %2, %3, %cst {dimension_numbers = #tpu.dot_dimension_numbers<[1], [0], [0], [1], [0, 0, 1, 1], [], []>} : vector<16x32xbf16>, vector<32x64xbf16>, vector<16x64xf32> -> vector<16x64xf32>
    %5 = vector.shape_cast %4 : vector<16x64xf32> to vector<2x8x64xf32>
    %6 = vector.extract_strided_slice %5 {offsets = [0, 0, 0], sizes = [2, 8, 32], strides = [1, 1, 1]} : vector<2x8x64xf32> to vector<2x8x32xf32>
    %7 = vector.extract_strided_slice %5 {offsets = [0, 0, 32], sizes = [2, 8, 32], strides = [1, 1, 1]} : vector<2x8x64xf32> to vector<2x8x32xf32>
    %8 = tpu.concatenate %6, %7 in 1 : vector<2x8x32xf32>, vector<2x8x32xf32> -> vector<2x16x32xf32>
    %c0_4 = arith.constant 0 : index
    %c0_5 = arith.constant 0 : index
    %9 = vector.load %arg2[%c0_4, %c0_5] : memref<8x16xbf16, #tpu.memory_space<vmem>>, vector<8x16xbf16>
    %10 = vector.shape_cast %9 : vector<8x16xbf16> to vector<1x8x16xbf16>
    %11 = vector.broadcast %10 : vector<1x8x16xbf16> to vector<2x8x16xbf16>
    %12 = arith.truncf %8 : vector<2x16x32xf32> to vector<2x16x32xbf16>
    "tpu.trace_start"() <{level = 10 : i32, message = "bps,bsd->bpd"}> : () -> ()
    %cst_6 = arith.constant dense<0.000000e+00> : vector<2x8x32xf32>
    %13 = tpu.matmul %11, %12, %cst_6 {dimension_numbers = #tpu.dot_dimension_numbers<[2], [1], [1], [2], [0, 0, 0, 1, 1, 2], [0], [0]>} : vector<2x8x16xbf16>, vector<2x16x32xbf16>, vector<2x8x32xf32> -> vector<2x8x32xf32>
    "tpu.trace_stop"() : () -> ()
    %14 = arith.addf %13, %0 : vector<2x8x32xf32>
    %cst_7 = arith.constant dense<0.000000e+00> : vector<2x8xf32>
    %15 = vector.multi_reduction <add>, %14, %cst_7 [2] : vector<2x8x32xf32> to vector<2x8xf32>
    %16 = vector.shape_cast %15 : vector<2x8xf32> to vector<2x8x1xf32>
    %cst_8 = arith.constant 3.200000e+01 : f32
    %17 = vector.broadcast %cst_8 : f32 to vector<2x8x1xf32>
    %18 = arith.divf %16, %17 : vector<2x8x1xf32>
    %19 = vector.broadcast %18 : vector<2x8x1xf32> to vector<2x8x32xf32>
    %20 = arith.subf %14, %19 : vector<2x8x32xf32>
    %21 = arith.mulf %20, %20 : vector<2x8x32xf32>
    %cst_9 = arith.constant dense<0.000000e+00> : vector<2x8xf32>
    %22 = vector.multi_reduction <add>, %21, %cst_9 [2] : vector<2x8x32xf32> to vector<2x8xf32>
    %23 = vector.shape_cast %22 : vector<2x8xf32> to vector<2x8x1xf32>
    %cst_10 = arith.constant 3.200000e+01 : f32
    %24 = vector.broadcast %cst_10 : f32 to vector<2x8x1xf32>
    %25 = arith.divf %23, %24 : vector<2x8x1xf32>
    %cst_11 = arith.constant 9.99999974E-6 : f32
    %26 = vector.broadcast %cst_11 : f32 to vector<2x8x1xf32>
    %27 = arith.addf %25, %26 : vector<2x8x1xf32>
    %28 = math.rsqrt %27 : vector<2x8x1xf32>
    %29 = vector.broadcast %28 : vector<2x8x1xf32> to vector<2x8x32xf32>
    %30 = arith.mulf %20, %29 : vector<2x8x32xf32>
    %c0_12 = arith.constant 0 : index
    %c0_13 = arith.constant 0 : index
    %31 = vector.load %arg4[%c0_12, %c0_13] : memref<1x32xf32, #tpu.memory_space<vmem>>, vector<1x32xf32>
    %32 = vector.shape_cast %31 : vector<1x32xf32> to vector<1x1x32xf32>
    %33 = vector.broadcast %32 : vector<1x1x32xf32> to vector<2x8x32xf32>
    %34 = arith.mulf %30, %33 : vector<2x8x32xf32>
    %c0_14 = arith.constant 0 : index
    %c0_15 = arith.constant 0 : index
    %35 = vector.load %arg5[%c0_14, %c0_15] : memref<1x32xf32, #tpu.memory_space<vmem>>, vector<1x32xf32>
    %36 = vector.shape_cast %35 : vector<1x32xf32> to vector<1x1x32xf32>
    %37 = vector.broadcast %36 : vector<1x1x32xf32> to vector<2x8x32xf32>
    %38 = arith.addf %34, %37 : vector<2x8x32xf32>
    %c0_16 = arith.constant 0 : index
    %c0_17 = arith.constant 0 : index
    %c0_18 = arith.constant 0 : index
    %39 = vector.load %arg6[%c0_16, %c0_17, %c0_18] : memref<2x8x32xf32, #tpu.memory_space<vmem>>, vector<2x8x32xf32>
    tpu.vector_store %arg6[%c0_16, %c0_17, %c0_18], %38 {strides = array<i32>} : memref<2x8x32xf32, #tpu.memory_space<vmem>>, vector<2x8x32xf32>,
    return
  }
  func.func @transform_0(%arg0: i32) -> (i32, i32, i32) {
    %c0_i32 = arith.constant 0 : i32
    %c0_i32_0 = arith.constant 0 : i32
    %c0_i32_1 = arith.constant 0 : i32
    return %arg0, %c0_i32, %c0_i32_0 : i32, i32, i32
  }
  func.func @transform_1(%arg0: i32) -> (i32, i32) {
    %c0_i32 = arith.constant 0 : i32
    %c0_i32_0 = arith.constant 0 : i32
    %c0_i32_1 = arith.constant 0 : i32
    return %c0_i32, %c0_i32_0 : i32, i32
  }
  func.func @transform_2(%arg0: i32) -> (i32, i32) {
    %c0_i32 = arith.constant 0 : i32
    %c0_i32_0 = arith.constant 0 : i32
    %c0_i32_1 = arith.constant 0 : i32
    return %c0_i32, %c0_i32_0 : i32, i32
  }
  func.func @transform_3(%arg0: i32) -> (i32, i32) {
    %c0_i32 = arith.constant 0 : i32
    %c0_i32_0 = arith.constant 0 : i32
    %c0_i32_1 = arith.constant 0 : i32
    return %c0_i32, %c0_i32_0 : i32, i32
  }
  func.func @transform_4(%arg0: i32) -> (i32, i32) {
    %c0_i32 = arith.constant 0 : i32
    %c0_i32_0 = arith.constant 0 : i32
    %c0_i32_1 = arith.constant 0 : i32
    return %c0_i32, %c0_i32_0 : i32, i32
  }
  func.func @transform_5(%arg0: i32) -> (i32, i32, i32) {
    %c0_i32 = arith.constant 0 : i32
    %c0_i32_0 = arith.constant 0 : i32
    %c0_i32_1 = arith.constant 0 : i32
    return %arg0, %c0_i32, %c0_i32_0 : i32, i32, i32
  }
}

</mosaic_0001>

<llo_original>
// kernel: tpu_custom_call.1
$region0: #{tpu_custom_call.1}
  #allocation0 [shape = 'u32[]', space=smem, size = 0x4, offset = 0x4, fixed_abs, tag = 'smem constant byte address 0x4 - core index']
  #allocation1 [shape = 'u32[72,128]{1,0:T(1,128)}', space=vmem, size = 0x9000, scoped, tag = 'internal scratch']
  %s0 = inlined_call_operand.hbm [shape: f32[2,8,32], index: 0, kind: input, shape index: {}]
  %s1 = inlined_call_operand.hbm [shape: bf16[8,16], index: 1, kind: input, shape index: {}]
  %s2 = inlined_call_operand.hbm [shape: bf16[32,64], index: 2, kind: input, shape index: {}]
  %s3 = inlined_call_operand.vmem [shape: f32[1,32], index: 3, kind: input, shape index: {}]
  %s4 = inlined_call_operand.vmem [shape: f32[1,32], index: 4, kind: input, shape index: {}]
  %s5 = inlined_call_operand.hbm [shape: f32[2,8,32], index: 5, kind: output, shape index: {}]
  %s6 = sld [smem:[#allocation0]]
  $region42: #{tpu_custom_call.1} parent=0
    _
  %s8 = ssub.s32 1, %s6
  %s9 = scalar_select 0, %s8, %s6
  $region1: #{tpu_custom_call.1} parent=0
    #allocation2 [shape = 'u8[8192]{0}', space=vmem, size = 0x2000, scoped, tag = 'input window, operand 0, single buffered']
    #allocation3 [shape = 's32[1]{0}', space=sflag, size = 0x4, scoped, tag = 'scoped memory for tpu_custom_call.1']
    #allocation4 [shape = 's32[1]{0}', space=sflag, size = 0x4, scoped, tag = 'scoped memory for tpu_custom_call.1']
    #allocation5 [shape = 'u8[2048]{0}', space=vmem, size = 0x800, scoped, tag = 'input window, operand 1, single buffered']
    #allocation6 [shape = 's32[1]{0}', space=sflag, size = 0x4, scoped, tag = 'scoped memory for tpu_custom_call.1']
    #allocation7 [shape = 'u8[8192]{0}', space=vmem, size = 0x2000, scoped, tag = 'input window, operand 2, single buffered']
    #allocation8 [shape = 'u8[8192]{0}', space=vmem, size = 0x2000, scoped, tag = 'output window, operand 0, single buffered']
    %10 = vsyncpa [#allocation3], 0
    %11 = vsyncpa [#allocation6], 0
    %12 = vsyncpa [#allocation4], 0
    // Predicated region
    $region2: #{tpu_custom_call.1} parent=1 // pred_check
      _
    $region3: #{tpu_custom_call.1} parent=1 // pred_check_branch
      %14 = sbr.rel (0) target = $region5
    $region4: #{tpu_custom_call.1} parent=1 // pred_region
      %16 = vsyncadd [#allocation3], 0
      %s17 = sshll.u32 %s0, 4
      %s18 = int_to_ptr.hbm [resolvable:$true] %s17
      %s19 = sshll.u32 [#allocation2], 4
      %s20 = int_to_ptr.vmem [resolvable:$true] %s19
      %25 = dma.hbm_to_vmem [thread:$0]  %s18, 256, %s20, [#allocation3], 128, 128, 8
    $region5: #{tpu_custom_call.1} parent=1 // pred_fallthru
      _
    // Predicated region
    $region6: #{tpu_custom_call.1} parent=1 // pred_check
      _
    $region7: #{tpu_custom_call.1} parent=1 // pred_check_branch
      %27 = sbr.rel (0) target = $region9
    $region8: #{tpu_custom_call.1} parent=1 // pred_region
      %29 = vsyncadd [#allocation6], 0
      %s31 = sshll.u32 %s1, 4
      %s32 = int_to_ptr.hbm [resolvable:$true] %s31
      %s33 = sshll.u32 [#allocation5], 4
      %s34 = int_to_ptr.vmem [resolvable:$true] %s33
      %36 = dma.hbm_to_vmem [thread:$0]  %s32, 64, %s34, [#allocation6]
    $region9: #{tpu_custom_call.1} parent=1 // pred_fallthru
      _
    // Predicated region
    $region10: #{tpu_custom_call.1} parent=1 // pred_check
      _
    $region11: #{tpu_custom_call.1} parent=1 // pred_check_branch
      %38 = sbr.rel (0) target = $region13
    $region12: #{tpu_custom_call.1} parent=1 // pred_region
      %40 = vsyncadd [#allocation6], 0
      %s41 = sshll.u32 %s2, 4
      %s42 = int_to_ptr.hbm [resolvable:$true] %s41
      %s43 = sshll.u32 [#allocation7], 4
      %s44 = int_to_ptr.vmem [resolvable:$true] %s43
      %49 = dma.hbm_to_vmem [thread:$0]  %s42, 256, %s44, [#allocation6], 64, 64, 4
    $region13: #{tpu_custom_call.1} parent=1 // pred_fallthru
      _
    // Predicated region
    $region14: #{tpu_custom_call.1} parent=1 // pred_check
      _
    $region15: #{tpu_custom_call.1} parent=1 // pred_check_branch
      %51 = sbr.rel (0) target = $region17
    $region16: #{tpu_custom_call.1} parent=1 // pred_region
      _
    $region17: #{tpu_custom_call.1} parent=1 // pred_fallthru
      _
    // Predicated region
    $region18: #{tpu_custom_call.1} parent=1 // pred_check
      _
    $region19: #{tpu_custom_call.1} parent=1 // pred_check_branch
      %53 = sbr.rel (0) target = $region21
    $region20: #{tpu_custom_call.1} parent=1 // pred_region
      _
    $region21: #{tpu_custom_call.1} parent=1 // pred_fallthru
      _
    // Predicated region
    $region22: #{tpu_custom_call.1} parent=1 // pred_check
      _
    $region23: #{tpu_custom_call.1} parent=1 // pred_check_branch
      %55 = sbr.rel (0) target = $region25
    $region24: #{tpu_custom_call.1} parent=1 // pred_region
      %57 = dma.done [#allocation3], 256
    $region25: #{tpu_custom_call.1} parent=1 // pred_fallthru
      _
    // Predicated region
    $region26: #{tpu_custom_call.1} parent=1 // pred_check
      _
    $region27: #{tpu_custom_call.1} parent=1 // pred_check_branch
      %59 = sbr.rel (0) target = $region29
    $region28: #{tpu_custom_call.1} parent=1 // pred_region
      %61 = dma.done [#allocation6], 64
    $region29: #{tpu_custom_call.1} parent=1 // pred_fallthru
      _
    // Predicated region
    $region30: #{tpu_custom_call.1} parent=1 // pred_check
      _
    $region31: #{tpu_custom_call.1} parent=1 // pred_check_branch
      %63 = sbr.rel (0) target = $region33
    $region32: #{tpu_custom_call.1} parent=1 // pred_region
      %65 = dma.done [#allocation6], 256
    $region33: #{tpu_custom_call.1} parent=1 // pred_fallthru
      _
    %v67 = vld [vmem:[#allocation2] sm:$0xff]
    %v68 = vld [vmem:[#allocation2 + $0x8] sm:$0xff]
    %v69 = vpack.c.bf16 %v68, %v67
    %v70 = vld [vmem:[#allocation7] sm:$0xf]
    %v71 = vld [vmem:[#allocation7 + $0x4] sm:$0xf]
    %v72 = vld [vmem:[#allocation7 + $0x8] sm:$0xf]
    %v73 = vld [vmem:[#allocation7 + $0xc] sm:$0xf]
    %v78 = vunpack.c.l.b16 %v70
    %v79 = vunpack.c.l.b16 %v71
    %v80 = vunpack.c.l.b16 %v72
    %v81 = vunpack.c.l.b16 %v73
    %v82 = vpack.c.b16 %v79, %v78
    %v83 = vpack.c.b16 %v81, %v80
    %vm86 = vcmask 261120
    %v88 = vsel %vm86, %v69, 0
    %90 = vmatpush.bf16.msra.mxu0 0
    %91 = vmatpush.bf16.msra.mxu0 0
    %92 = vmatpush.bf16.msra.mxu0 0
    %93 = vmatpush.bf16.msra.mxu0 0
    %94 = vmatpush.bf16.msra.mxu0 0
    %95 = vmatpush.bf16.msra.mxu0 0
    %96 = vmatpush.bf16.msra.mxu0 %v83
    %97 = vmatpush.bf16.msra.mxu0 %v82
    %98 = vmatmul.bf16.gmra.mxu0 %v88
    %v99 = vpop.f32.mrf.mxu0
    %v100 = vadd.f32 0.0, %v99
    %v101 = vpop.f32.mrf.mxu0
    %v102 = vadd.f32 0.0, %v101
    %103 = vdwg.mxu0
    %106 = vrot.lane.b32.xlu0 %v100, 96
    %v107 = vpop.permute.xlu0 %106
    %108 = vrot.lane.b32.xlu0 %v102, 96
    %v109 = vpop.permute.xlu0 %108
    %v112 = vld [vmem:[#allocation5] sm:$0xf]
    %v113 = vpack.c.bf16 %v100, %v100
    %v114 = vpack.c.bf16 %v107, %v107
    %v115 = vpack.c.bf16 %v102, %v102
    %v116 = vpack.c.bf16 %v109, %v109
    %v119 = vunpack.c.l.b16 %v113
    %v120 = vunpack.c.l.b16 %v114
    %v121 = vpack.c.b16 %v120, %v119
    %vm123 = vcmask 130048
    %v125 = vsel %vm123, %v112, 0
    %127 = vmatpush.bf16.msra.mxu0 0
    %128 = vmatpush.bf16.msra.mxu0 0
    %129 = vmatpush.bf16.msra.mxu0 0
    %130 = vmatpush.bf16.msra.mxu0 0
    %131 = vmatpush.bf16.msra.mxu0 0
    %132 = vmatpush.bf16.msra.mxu0 0
    %133 = vmatpush.bf16.msra.mxu0 0
    %134 = vmatpush.bf16.msra.mxu0 %v121
    %135 = vmatmul.bf16.gmra.mxu0 %v125
    %v136 = vpop.f32.mrf.mxu0
    %v137 = vadd.f32 %v67, %v136
    %v138 = vpop.f32.mrf.mxu0
    %139 = vdwg.mxu0
    %v142 = vunpack.c.l.b16 %v115
    %v143 = vunpack.c.l.b16 %v116
    %v144 = vpack.c.b16 %v143, %v142
    %146 = vmatpush.bf16.msra.mxu0 0
    %147 = vmatpush.bf16.msra.mxu0 0
    %148 = vmatpush.bf16.msra.mxu0 0
    %149 = vmatpush.bf16.msra.mxu0 0
    %150 = vmatpush.bf16.msra.mxu0 0
    %151 = vmatpush.bf16.msra.mxu0 0
    %152 = vmatpush.bf16.msra.mxu0 0
    %153 = vmatpush.bf16.msra.mxu0 %v144
    %154 = vmatmul.bf16.gmra.mxu0 %v125
    %v155 = vpop.f32.mrf.mxu0
    %v156 = vadd.f32 %v68, %v155
    %v157 = vpop.f32.mrf.mxu0
    %158 = vdwg.mxu0
    %v159 = vsel %vm86, %v137, 0.0
    %160 = vadd.xlane.f32.xlu0 %v159
    %v161 = vpop.xlane.xlu0 %160
    %v162 = vsel %vm86, %v156, 0.0
    %163 = vadd.xlane.f32.xlu0 %v162
    %v164 = vpop.xlane.xlu0 %163
    %v165 = vrcp.pop 32.0
    %v166 = vmul.f32 32.0, %v165
    %v167 = vsub.f32 1.0, %v166
    %v168 = vmul.f32 %v165, %v167
    %v169 = vadd.f32 %v165, %v168
    %vm170 = vweird.f32 %v165
    %v171 = vsel %vm170, %v165, %v169
    %v172 = vmul.f32 %v161, %v171
    %v173 = vmul.f32 %v164, %v171
    %v174 = vsub.f32 %v137, %v172
    %v175 = vsub.f32 %v156, %v173
    %v176 = vmul.f32 %v174, %v174
    %v177 = vmul.f32 %v175, %v175
    %v178 = vsel %vm86, %v176, 0.0
    %179 = vadd.xlane.f32.xlu0 %v178
    %v180 = vpop.xlane.xlu0 %179
    %v181 = vsel %vm86, %v177, 0.0
    %182 = vadd.xlane.f32.xlu0 %v181
    %v183 = vpop.xlane.xlu0 %182
    %v184 = vmul.f32 %v180, %v171
    %v185 = vmul.f32 %v183, %v171
    %v186 = vadd.f32 %v184, 1e-05
    %v187 = vadd.f32 %v185, 1e-05
    %v188 = vrsqrt.pop %v186
    %v189 = vmul.f32 %v188, %v186
    %v190 = vmul.f32 %v189, %v188
    %v191 = vmul.f32 0.5, %v190
    %v192 = vsub.f32 1.5, %v191
    %v193 = vmul.f32 %v188, %v192
    %vm194 = vweird.f32 %v186
    %vm195 = vweird.f32 %v188
    %vm196 = vmor %vm194, %vm195
    %v197 = vsel %vm196, %v188, %v193
    %v198 = vrsqrt.pop %v187
    %v199 = vmul.f32 %v198, %v187
    %v200 = vmul.f32 %v199, %v198
    %v201 = vmul.f32 0.5, %v200
    %v202 = vsub.f32 1.5, %v201
    %v203 = vmul.f32 %v198, %v202
    %vm204 = vweird.f32 %v187
    %vm205 = vweird.f32 %v198
    %vm206 = vmor %vm204, %vm205
    %v207 = vsel %vm206, %v198, %v203
    %v208 = vmul.f32 %v174, %v197
    %v209 = vmul.f32 %v175, %v207
    %v210 = vld [vmem:[%s3] sm:$0x1]
    %v212 = vperm.slane %v210, 0
    %v214 = vmul.f32 %v208, %v212
    %v215 = vmul.f32 %v209, %v212
    %v216 = vld [vmem:[%s4] sm:$0x1]
    %v218 = vperm.slane %v216, 0
    %v220 = vadd.f32 %v214, %v218
    %v221 = vadd.f32 %v215, %v218
    %222 = vst.msk [vmem:[#allocation8] sm:$0xff] %vm86, %v220
    %223 = vst.msk [vmem:[#allocation8 + $0x8] sm:$0xff] %vm86, %v221
    // Predicated region
    $region34: #{tpu_custom_call.1} parent=1 // pred_check
      _
    $region35: #{tpu_custom_call.1} parent=1 // pred_check_branch
      %225 = sbr.rel (0) target = $region37
    $region36: #{tpu_custom_call.1} parent=1 // pred_region
      %227 = vsyncadd [#allocation4], 0
      %s228 = sshll.u32 [#allocation8], 4
      %s229 = int_to_ptr.vmem [resolvable:$true] %s228
      %s230 = sshll.u32 %s5, 4
      %s231 = int_to_ptr.hbm [resolvable:$true] %s230
      %236 = dma.vmem_to_hbm [thread:$0]  %s229, 256, %s231, [#allocation4], 128, 128, 8
    $region37: #{tpu_custom_call.1} parent=1 // pred_fallthru
      _
    // Predicated region
    $region38: #{tpu_custom_call.1} parent=1 // pred_check
      _
    $region39: #{tpu_custom_call.1} parent=1 // pred_check_branch
      %238 = sbr.rel (0) target = $region41
    $region40: #{tpu_custom_call.1} parent=1 // pred_region
      %240 = dma.done [#allocation4], 256
    $region41: #{tpu_custom_call.1} parent=1 // pred_fallthru
      _
    %241 = vsyncpa [#allocation3], 1
    %242 = vsyncpa [#allocation6], 1
    %243 = vsyncpa [#allocation4], 1

</llo_original>
